<compile_context>
chip_gen: v7x
topology: tpu7x:2x2x1
jax: 0.10.0
libtpu: 0.0.40
codegen_flags: <defaults>
</compile_context>

<pallas_src>
import functools

import jax
import jax.numpy as jnp
from jax.experimental import pallas as pl
from jax.experimental.pallas import tpu as pltpu


def _layernorm_kernel(x_ref, g_ref, o_ref, *, eps):
    # x_ref: (block_rows, D) in input dtype; g_ref: (1, D) float32.
    x = x_ref[...].astype(jnp.float32)
    mean = jnp.mean(x, axis=-1, keepdims=True)
    xc = x - mean
    # torch.var(..., unbiased=False) == E[(x - mean)^2]
    var = jnp.mean(xc * xc, axis=-1, keepdims=True)
    inv = jax.lax.rsqrt(jnp.maximum(var, eps))           # var.clamp(min=eps).rsqrt()
    o_ref[...] = (xc * (inv * g_ref[...])).astype(o_ref.dtype)


def _round_up(x, m):
    return ((x + m - 1) // m) * m


def _generation_params():
    """Trace-time hardware query -> (target input bytes per block, vmem limit, 2 TCs?)."""
    vmem_cap = None
    try:
        info = pltpu.get_tpu_info()
        vmem_cap = int(getattr(info, "vmem_capacity_bytes", 0)) or None
    except Exception:
        vmem_cap = None
    if vmem_cap is None:
        vmem_cap = 64 * 1024 * 1024  # conservative (v7x-sized) default

    if vmem_cap <= 64 * 1024 * 1024:
        # v7x: 64 MiB VMEM, 3.2 TB/s HBM, 2 TensorCores per chip.
        return 4 * 1024 * 1024, 48 * 1024 * 1024, True
    # v5e / v6e: 128 MiB VMEM, single TensorCore.
    return 6 * 1024 * 1024, 64 * 1024 * 1024, False


def _choose_block_rows(rows, d, dtype_bytes, target_bytes, two_cores):
    """Byte-budgeted, dtype-aligned row tile for a (rows, d) streaming op."""
    # Sub-32-bit dtypes pack along sublanes: keep whole packed row groups so
    # DMA and vst stay unmasked on full blocks (8 rows f32, 16 bf16, 32 int8).
    row_align = 8 * max(1, 4 // dtype_bytes)

    br = (target_bytes // max(1, d * dtype_bytes)) // row_align * row_align
    br = max(row_align, br)

    # Keep >= 2 grid steps when the problem allows it (double-buffered
    # pipelining); never exceed the (aligned) problem size.
    cap = max(row_align, _round_up(pl.cdiv(rows, 2), row_align))
    br = min(br, cap)
    br = min(br, _round_up(rows, row_align))

    if two_cores:
        # Prefer an even step count so the 'parallel' axis splits evenly
        # across v7x's two TensorCores (avoids a lopsided 3/2-style tail).
        steps = pl.cdiv(rows, br)
        if steps > 1 and steps % 2 == 1:
            for cand in (_round_up(pl.cdiv(rows, steps + 1), row_align),
                         br - row_align,
                         br + row_align):
                if cand < row_align or cand > cap:
                    continue
                if pl.cdiv(rows, cand) % 2 == 0:
                    br = cand
                    break
    return br


def layer_norm(x, g):
    """LayerNorm over the last axis of x (B, N, D), learned scale g of shape (D,)."""
    B, N, D = x.shape
    eps = 1e-5 if x.dtype == jnp.float32 else 1e-3

    rows = B * N
    dtype_bytes = jnp.dtype(x.dtype).itemsize
    target_bytes, vmem_limit, two_cores = _generation_params()
    block_rows = _choose_block_rows(rows, D, dtype_bytes, target_bytes, two_cores)
    num_steps = pl.cdiv(rows, block_rows)

    # No explicit padding: Pallas masks the ragged last block (block_rows is a
    # multiple of the sublane group and D equals the full feature dim, so the
    # (8,128) BlockSpec rule is satisfied).
    x2 = x.reshape(rows, D)
    # Keep the learned scale in float32 (do NOT downcast to x.dtype).
    g2 = g.reshape(1, D).astype(jnp.float32)

    kernel = functools.partial(_layernorm_kernel, eps=eps)
    out = pl.pallas_call(
        kernel,
        out_shape=jax.ShapeDtypeStruct((rows, D), x.dtype),
        grid_spec=pltpu.PrefetchScalarGridSpec(
            num_scalar_prefetch=0,
            grid=(num_steps,),
            in_specs=[
                pl.BlockSpec((block_rows, D), lambda i: (i, 0)),
                pl.BlockSpec((1, D), lambda i: (0, 0)),
            ],
            out_specs=pl.BlockSpec((block_rows, D), lambda i: (i, 0)),
        ),
        compiler_params=pltpu.CompilerParams(
            dimension_semantics=("parallel",),
            vmem_limit_bytes=vmem_limit,
        ),
    )(x2, g2)

    return out.reshape(B, N, D)


def layer_norm_ref(x, g):
    """Pure-JAX reference mirroring the PyTorch forward."""
    eps = 1e-5 if x.dtype == jnp.float32 else 1e-3
    xf = x.astype(jnp.float32)
    mean = jnp.mean(xf, axis=2, keepdims=True)
    var = jnp.mean((xf - mean) ** 2, axis=2, keepdims=True)
    out = (xf - mean) * jax.lax.rsqrt(jnp.maximum(var, eps)) * g.astype(jnp.float32)
    return out.astype(x.dtype)


if __name__ == "__main__":
    key = jax.random.PRNGKey(0)
    kx, kg, kx2, kx3, kg3 = jax.random.split(key, 5)

    # Case 1: module-default small shape (B, N, D) = (2, 8, 32), float32.
    B, N, D = 2, 8, 32
    x = jax.random.normal(kx, (B, N, D), dtype=jnp.float32)
    # nn.Parameter(torch.ones(dim)); perturb deterministically so it matters.
    g = jnp.ones((D,), jnp.float32) + 0.01 * jax.random.normal(kg, (D,), jnp.float32)
    out = layer_norm(x, g)
    jax.block_until_ready(out)
    ref = layer_norm_ref(x, g)
    assert out.shape == (B, N, D) and out.dtype == x.dtype
    assert jnp.allclose(out, ref, atol=1e-5, rtol=1e-5), "f32 mismatch vs reference"

    # Case 2: row count not a multiple of the sublane tile (ragged last block).
    x2 = jax.random.normal(kx2, (1, 7, D), dtype=jnp.float32)
    out2 = layer_norm(x2, g)
    jax.block_until_ready(out2)
    assert jnp.allclose(out2, layer_norm_ref(x2, g), atol=1e-5, rtol=1e-5), \
        "ragged-rows mismatch vs reference"

    # Case 3: bf16 input with lane-dense feature dim (D % 128 == 0).
    D3 = 256
    x3 = jax.random.normal(kx3, (2, 12, D3), dtype=jnp.float32).astype(jnp.bfloat16)
    g3 = jnp.ones((D3,), jnp.float32) + 0.01 * jax.random.normal(kg3, (D3,), jnp.float32)
    out3 = layer_norm(x3, g3)
    jax.block_until_ready(out3)
    ref3 = layer_norm_ref(x3, g3)
    assert out3.dtype == jnp.bfloat16
    assert jnp.allclose(out3.astype(jnp.float32), ref3.astype(jnp.float32),
                        atol=2e-2, rtol=2e-2), "bf16 mismatch vs reference"

    print("KERNEL_OK")
</pallas_src>

<mosaic_0001>
module attributes {stable_mosaic.version = 11 : i64} {
  func.func @_layernorm_kernel(%arg0: i32, %arg1: memref<8x32xf32, #tpu.memory_space<vmem>>, %arg2: memref<1x32xf32, #tpu.memory_space<vmem>>, %arg3: memref<8x32xf32, #tpu.memory_space<vmem>>) attributes {dimension_semantics = [#tpu.dimension_semantics<parallel>], iteration_bounds = array<i64: 2>, scalar_prefetch = 0 : i64, scratch_operands = 0 : i64, tpu.core_type = #tpu.core_type<tc>, window_params = [{transform_indices = @transform_0, window_bounds = array<i64: 8, 32>}, {pipeline_mode = #tpu.pipeline_mode<synchronous>, transform_indices = @transform_1, window_bounds = array<i64: 1, 32>}, {transform_indices = @transform_2, window_bounds = array<i64: 8, 32>}]} {
    %c0 = arith.constant 0 : index
    %c0_0 = arith.constant 0 : index
    %0 = vector.load %arg1[%c0, %c0_0] : memref<8x32xf32, #tpu.memory_space<vmem>>, vector<8x32xf32>
    %cst = arith.constant dense<0.000000e+00> : vector<8xf32>
    %1 = vector.multi_reduction <add>, %0, %cst [1] : vector<8x32xf32> to vector<8xf32>
    %2 = vector.shape_cast %1 : vector<8xf32> to vector<8x1xf32>
    %cst_1 = arith.constant 3.200000e+01 : f32
    %3 = vector.broadcast %cst_1 : f32 to vector<8x1xf32>
    %4 = arith.divf %2, %3 : vector<8x1xf32>
    %5 = vector.broadcast %4 : vector<8x1xf32> to vector<8x32xf32>
    %6 = arith.subf %0, %5 : vector<8x32xf32>
    %7 = arith.mulf %6, %6 : vector<8x32xf32>
    %cst_2 = arith.constant dense<0.000000e+00> : vector<8xf32>
    %8 = vector.multi_reduction <add>, %7, %cst_2 [1] : vector<8x32xf32> to vector<8xf32>
    %9 = vector.shape_cast %8 : vector<8xf32> to vector<8x1xf32>
    %cst_3 = arith.constant 3.200000e+01 : f32
    %10 = vector.broadcast %cst_3 : f32 to vector<8x1xf32>
    %11 = arith.divf %9, %10 : vector<8x1xf32>
    %cst_4 = arith.constant 9.99999974E-6 : f32
    %12 = vector.broadcast %cst_4 : f32 to vector<8x1xf32>
    %13 = arith.maximumf %11, %12 : vector<8x1xf32>
    %14 = math.rsqrt %13 : vector<8x1xf32>
    %c0_5 = arith.constant 0 : index
    %c0_6 = arith.constant 0 : index
    %15 = vector.load %arg2[%c0_5, %c0_6] : memref<1x32xf32, #tpu.memory_space<vmem>>, vector<1x32xf32>
    %16 = vector.broadcast %14 : vector<8x1xf32> to vector<8x32xf32>
    %17 = vector.broadcast %15 : vector<1x32xf32> to vector<8x32xf32>
    %18 = arith.mulf %16, %17 : vector<8x32xf32>
    %19 = arith.mulf %6, %18 : vector<8x32xf32>
    %c0_7 = arith.constant 0 : index
    %c0_8 = arith.constant 0 : index
    %20 = vector.load %arg3[%c0_7, %c0_8] : memref<8x32xf32, #tpu.memory_space<vmem>>, vector<8x32xf32>
    tpu.vector_store %arg3[%c0_7, %c0_8], %19 {strides = array<i32>} : memref<8x32xf32, #tpu.memory_space<vmem>>, vector<8x32xf32>,
    return
  }
  func.func @transform_0(%arg0: i32) -> (i32, i32) {
    %c0_i32 = arith.constant 0 : i32
    %c0_i32_0 = arith.constant 0 : i32
    return %arg0, %c0_i32 : i32, i32
  }
  func.func @transform_1(%arg0: i32) -> (i32, i32) {
    %c0_i32 = arith.constant 0 : i32
    %c0_i32_0 = arith.constant 0 : i32
    %c0_i32_1 = arith.constant 0 : i32
    return %c0_i32, %c0_i32_0 : i32, i32
  }
  func.func @transform_2(%arg0: i32) -> (i32, i32) {
    %c0_i32 = arith.constant 0 : i32
    %c0_i32_0 = arith.constant 0 : i32
    return %arg0, %c0_i32 : i32, i32
  }
}

</mosaic_0001>

<llo_original>
// kernel: tpu_custom_call.1
$region0: #{tpu_custom_call.1}
  #allocation0 [shape = 'u32[]', space=smem, size = 0x4, offset = 0x4, fixed_abs, tag = 'smem constant byte address 0x4 - core index']
  #allocation1 [shape = 'u32[144,128]{1,0:T(1,128)}', space=vmem, size = 0x12000, scoped, tag = 'internal scratch']
  %s0 = inlined_call_operand.hbm [shape: f32[16,32], index: 0, kind: input, shape index: {}]
  %s1 = inlined_call_operand.vmem [shape: f32[1,32], index: 1, kind: input, shape index: {}]
  %s2 = inlined_call_operand.hbm [shape: f32[16,32], index: 2, kind: output, shape index: {}]
  %s3 = sld [smem:[#allocation0]]
  $region45: #{tpu_custom_call.1} parent=0
    _
  %s5 = ssub.s32 1, %s3
  %s6 = scalar_select 0, %s5, %s3
  $region1: #{tpu_custom_call.1} parent=0
    #allocation2 [shape = 'u8[8192]{0}', space=vmem, size = 0x2000, scoped, tag = 'input window, operand 0']
    #allocation3 [shape = 's32[2]{0}', space=sflag, size = 0x8, scoped, tag = 'scoped memory for tpu_custom_call.1']
    #allocation4 [shape = 's32[2]{0}', space=sflag, size = 0x8, scoped, tag = 'scoped memory for tpu_custom_call.1']
    #allocation5 [shape = 'u8[8192]{0}', space=vmem, size = 0x2000, scoped, tag = 'output window, operand 0']
    %7 = vsyncpa [#allocation3], 0
    %s8 = scalar_lea.sflag [#allocation3], 1
    %9 = vsyncpa %s8, 0
    %10 = vsyncpa [#allocation4], 0
    %s11 = scalar_lea.sflag [#allocation4], 1
    %12 = vsyncpa %s11, 0
    loop: start=0, step=1, limit=4
    $region2: #{tpu_custom_call.1} parent=1 // loop_pre_header
      _
    $region3: #{tpu_custom_call.1} parent=1 // loop_header
      %s14 = sphi 0, %s18
      %p15 = scmp.ge.s32.totalorder %s14, 4
      %s24 = sphi 0, %s26
      %s27 = sphi 0, %s24
      %s28 = sphi 0, %s27
      %s44 = sphi 0, %s28
      %s48 = sphi 0, %s48
      %s50 = sphi 0, %s48
      %s51 = sphi 0, %s50
      %s65 = sphi 0, %s51
      %s71 = sphi 0, %s73
      %s74 = sphi 0, %s71
      %s75 = sphi 0, %s74
      %s91 = sphi 0, %s75
    $region4: #{tpu_custom_call.1} parent=1 // loop_header_branch
      %17 = sbr.rel (%p15) target = $region8
    $region5: #{tpu_custom_call.1} parent=1 // loop_body
      %s19 = ssub.s32 %s14, 1
      %s20 = ssub.s32 %s14, 2
      %s21 = sadd.s32 %s14, 1
      %s22 = ssub.s32 %s14, %s21
      %p23 = scmp.eq.s32.totalorder %s22, 0
      %s25 = sadd.s32 %s24, 1
      %s26 = scalar_select %p23, %s24, %s25
      %p29 = pneg %p23
      %p30 = scmp.eq.s32.totalorder %s14, 1
      %p31 = por %p29, %p30
      %p32 = scmp.ne.s32.totalorder %s24, %s27
      %p33 = scmp.eq.s32.totalorder %s14, 0
      %p34 = por %p32, %p33
      %p35 = scmp.ne.s32.totalorder %s24, %s27
      %p36 = scmp.eq.s32.totalorder %s19, 1
      %p37 = por %p35, %p36
      %p38 = scmp.ne.s32.totalorder %s27, %s28
      %p39 = scmp.eq.s32.totalorder %s19, 0
      %p40 = por %p38, %p39
      %p41 = scmp.ne.s32.totalorder %s27, %s28
      %p42 = scmp.eq.s32.totalorder %s20, 1
      %p43 = por %p41, %p42
      %p45 = scmp.ne.s32.totalorder %s28, %s44
      %p46 = scmp.eq.s32.totalorder %s20, 0
      %p47 = por %p45, %p46
      %s49 = sadd.s32 %s48, 1
      %p52 = scmp.eq.s32.totalorder %s14, 1
      %p53 = scmp.ne.s32.totalorder %s48, %s50
      %p54 = scmp.eq.s32.totalorder %s14, 0
      %p55 = por %p53, %p54
      %p56 = scmp.ne.s32.totalorder %s48, %s50
      %p57 = scmp.eq.s32.totalorder %s19, 1
      %p58 = por %p56, %p57
      %p59 = scmp.ne.s32.totalorder %s50, %s51
      %p60 = scmp.eq.s32.totalorder %s19, 0
      %p61 = por %p59, %p60
      %p62 = scmp.ne.s32.totalorder %s50, %s51
      %p63 = scmp.eq.s32.totalorder %s20, 1
      %p64 = por %p62, %p63
      %p66 = scmp.ne.s32.totalorder %s51, %s65
      %p67 = scmp.eq.s32.totalorder %s20, 0
      %p68 = por %p66, %p67
      %s69 = ssub.s32 %s14, %s21
      %p70 = scmp.eq.s32.totalorder %s69, 0
      %s72 = sadd.s32 %s71, 1
      %s73 = scalar_select %p70, %s71, %s72
      %p76 = pneg %p70
      %p77 = scmp.eq.s32.totalorder %s14, 1
      %p78 = por %p76, %p77
      %p79 = scmp.ne.s32.totalorder %s71, %s74
      %p80 = scmp.eq.s32.totalorder %s14, 0
      %p81 = por %p79, %p80
      %p82 = scmp.ne.s32.totalorder %s71, %s74
      %p83 = scmp.eq.s32.totalorder %s19, 1
      %p84 = por %p82, %p83
      %p85 = scmp.ne.s32.totalorder %s74, %s75
      %p86 = scmp.eq.s32.totalorder %s19, 0
      %p87 = por %p85, %p86
      %p88 = scmp.ne.s32.totalorder %s74, %s75
      %p89 = scmp.eq.s32.totalorder %s20, 1
      %p90 = por %p88, %p89
      %p92 = scmp.ne.s32.totalorder %s75, %s91
      %p93 = scmp.eq.s32.totalorder %s20, 0
      %p94 = por %p92, %p93
      %p95 = scmp.le.s32.totalorder 1, %s14
      %p96 = scmp.lt.s32.totalorder %s14, 3
      %p97 = pnand %p95, %p96
      %p98 = pneg %p97
      // Predicated region
      $region9: #{tpu_custom_call.1} parent=5 // pred_check
        _
      $region10: #{tpu_custom_call.1} parent=5 // pred_check_branch
        %100 = sbr.rel (%p97) target = $region12
      $region11: #{tpu_custom_call.1} parent=5 // pred_region
        %s101 = ssub.s32 %s14, 1
        // Predicated region
        $region13: #{tpu_custom_call.1} parent=11 // pred_check
          %p102 = pneg %p61
        $region14: #{tpu_custom_call.1} parent=11 // pred_check_branch
          %104 = sbr.rel (%p102) target = $region16
        $region15: #{tpu_custom_call.1} parent=11 // pred_region
          _
        $region16: #{tpu_custom_call.1} parent=11 // pred_fallthru
          _
      $region12: #{tpu_custom_call.1} parent=5 // pred_fallthru
        _
      %p105 = scmp.lt.s32.totalorder %s14, 2
      // Predicated region
      $region17: #{tpu_custom_call.1} parent=5 // pred_check
        %p106 = pneg %p105
      $region18: #{tpu_custom_call.1} parent=5 // pred_check_branch
        %108 = sbr.rel (%p106) target = $region20
      $region19: #{tpu_custom_call.1} parent=5 // pred_region
        // Predicated region
        $region21: #{tpu_custom_call.1} parent=19 // pred_check
          %p109 = pneg %p34
        $region22: #{tpu_custom_call.1} parent=19 // pred_check_branch
          %111 = sbr.rel (%p109) target = $region24
        $region23: #{tpu_custom_call.1} parent=19 // pred_region
          %s112 = sand.u32 %s24, 1
          %s113 = scalar_lea.sflag [#allocation3], %s112
          %s114 = sand.u32 %s24, 1
          %s115 = smul.addr %s114, 8
          %s116 = scalar_lea.vmem [#allocation2], %s115
          %s118 = ssub.s32 128, 128
          %119 = vsyncadd %s113, %s118
          %s120 = smul.addr %s14, 128
          %s121 = scalar_lea.hbm %s0, %s120
          %s123 = sshll.u32 %s116, 4
          %s124 = int_to_ptr.vmem [resolvable:$true] %s123
          %126 = dma.hbm_to_vmem [thread:$0]  %s121, 128, %s124, %s113
        $region24: #{tpu_custom_call.1} parent=19 // pred_fallthru
          _
      $region20: #{tpu_custom_call.1} parent=5 // pred_fallthru
        _
      %p127 = scmp.le.s32.totalorder 1, %s14
      %p128 = scmp.lt.s32.totalorder %s14, 3
      %p129 = pnand %p127, %p128
      %p130 = pneg %p129
      // Predicated region
      $region25: #{tpu_custom_call.1} parent=5 // pred_check
        _
      $region26: #{tpu_custom_call.1} parent=5 // pred_check_branch
        %132 = sbr.rel (%p129) target = $region28
      $region27: #{tpu_custom_call.1} parent=5 // pred_region
        %s133 = ssub.s32 %s14, 1
        %s134 = sand.u32 %s27, 1
        %s135 = scalar_lea.sflag [#allocation3], %s134
        %s136 = sand.u32 %s27, 1
        %s137 = smul.addr %s136, 8
        %s138 = scalar_lea.vmem [#allocation2], %s137
        // Predicated region
        $region29: #{tpu_custom_call.1} parent=27 // pred_check
          %p139 = pneg %p40
        $region30: #{tpu_custom_call.1} parent=27 // pred_check_branch
          %141 = sbr.rel (%p139) target = $region32
        $region31: #{tpu_custom_call.1} parent=27 // pred_region
          %142 = dma.done %s135, 128
        $region32: #{tpu_custom_call.1} parent=27 // pred_fallthru
          _
        %s143 = sand.u32 %s27, 1
        %s144 = scalar_lea.sflag [#allocation3], %s143
        %s145 = sand.u32 %s27, 1
        %s146 = smul.addr %s145, 8
        %s147 = scalar_lea.vmem [#allocation2], %s146
        %p148 = pneg %p40
        %p149 = pneg %p37
        %p150 = pneg %p61
        %p151 = pneg %p58
        %p152 = pneg %p87
        %p153 = pneg %p84
        %s154 = sand.u32 %s74, 1
        %s155 = scalar_lea.sflag [#allocation4], %s154
        %s156 = sand.u32 %s74, 1
        %s157 = smul.addr %s156, 8
        %s158 = scalar_lea.vmem [#allocation5], %s157
        %v159 = vld [vmem:[%s138] sm:$0xff]
        %vm160 = vcmask 261120
        %v161 = vsel %vm160, %v159, 0.0
        %162 = vadd.xlane.f32.xlu0 %v161
        %v163 = vpop.xlane.xlu0 %162
        %v164 = vrcp.pop 32.0
        %v165 = vmul.f32 %v163, %v164
        %v166 = vsub.f32 %v159, %v165
        %v167 = vmul.f32 %v166, %v166
        %v168 = vsel %vm160, %v167, 0.0
        %169 = vadd.xlane.f32.xlu0 %v168
        %v170 = vpop.xlane.xlu0 %169
        %v171 = vmul.f32 %v170, %v164
        %v172 = vmax.f32 %v171, 1e-05
        %v173 = vrsqrt.pop %v172
        %v174 = vld [vmem:[%s1] sm:$0x1]
        %v176 = vlaneseq
        %v177 = vshrl.u32 %v176, 7
        %v178 = vsub.s32 0, %v177
        %v179 = vrot.slane %v174, %v178
        %v181 = vmul.f32 %v173, %v179
        %v182 = vmul.f32 %v166, %v181
        %183 = vst.msk [vmem:[%s158] sm:$0xff] %vm160, %v182
        %s184 = sand.u32 %s74, 1
        %s185 = scalar_lea.sflag [#allocation4], %s184
        %s186 = sand.u32 %s74, 1
        %s187 = smul.addr %s186, 8
        %s188 = scalar_lea.vmem [#allocation5], %s187
        // Predicated region
        $region33: #{tpu_custom_call.1} parent=27 // pred_check
          %p189 = pneg %p84
        $region34: #{tpu_custom_call.1} parent=27 // pred_check_branch
          %191 = sbr.rel (%p189) target = $region36
        $region35: #{tpu_custom_call.1} parent=27 // pred_region
          %s193 = ssub.s32 128, 128
          %194 = vsyncadd %s185, %s193
          %s195 = smul.addr %s19, 128
          %s196 = scalar_lea.hbm %s2, %s195
          %s198 = sshll.u32 %s188, 4
          %s199 = int_to_ptr.vmem [resolvable:$true] %s198
          %201 = dma.vmem_to_hbm [thread:$0]  %s199, 128, %s196, %s185
        $region36: #{tpu_custom_call.1} parent=27 // pred_fallthru
          _
      $region28: #{tpu_custom_call.1} parent=5 // pred_fallthru
        _
      %p202 = scmp.le.s32.totalorder 2, %s14
      // Predicated region
      $region37: #{tpu_custom_call.1} parent=5 // pred_check
        %p203 = pneg %p202
      $region38: #{tpu_custom_call.1} parent=5 // pred_check_branch
        %205 = sbr.rel (%p203) target = $region40
      $region39: #{tpu_custom_call.1} parent=5 // pred_region
        %s206 = ssub.s32 %s14, 2
        // Predicated region
        $region41: #{tpu_custom_call.1} parent=39 // pred_check
          %p207 = pneg %p90
        $region42: #{tpu_custom_call.1} parent=39 // pred_check_branch
          %209 = sbr.rel (%p207) target = $region44
        $region43: #{tpu_custom_call.1} parent=39 // pred_region
          %s210 = sand.u32 %s75, 1
          %s211 = scalar_lea.sflag [#allocation4], %s210
          %s212 = sand.u32 %s75, 1
          %s213 = smul.addr %s212, 8
          %s214 = scalar_lea.vmem [#allocation5], %s213
          %215 = dma.done %s211, 128
        $region44: #{tpu_custom_call.1} parent=39 // pred_fallthru
          _
      $region40: #{tpu_custom_call.1} parent=5 // pred_fallthru
        _
    $region6: #{tpu_custom_call.1} parent=1 // loop_footer
      %s18 = sadd.s32 1, %s14
    $region7: #{tpu_custom_call.1} parent=1 // loop_footer_branch
      %13 = sbr.rel target = $region3
    $region8: #{tpu_custom_call.1} parent=1 // loop_exit
      _
    %216 = vsyncpa [#allocation3], 1
    %s217 = scalar_lea.sflag [#allocation3], 1
    %218 = vsyncpa %s217, 1
    %219 = vsyncpa [#allocation4], 1
    %s220 = scalar_lea.sflag [#allocation4], 1
    %221 = vsyncpa %s220, 1

</llo_original>
